<compile_context>
chip_gen: v7x
topology: tpu7x:2x2x1
jax: 0.10.0
libtpu: 0.0.40
codegen_flags: <defaults>
</compile_context>

<pallas_src>
import jax
import jax.numpy as jnp
from jax import lax
from jax.experimental import pallas as pl
from jax.experimental.pallas import tpu as pltpu

TEMPERATURE = 0.2                     # compute_contrastive_loss default
INV_TEMPERATURE = 1.0 / TEMPERATURE


def _round_up(x, m):
    return ((x + m - 1) // m) * m


def _vmem_budget_bytes():
    """Per-generation VMEM budget (v5e/v6e: 128 MiB phys, v7x: 64 MiB)."""
    try:
        cap = int(pltpu.get_tpu_info().vmem_capacity_bytes)
    except Exception:
        cap = 64 * 1024 * 1024        # conservative fallback = v7x physical
    return (min(cap, 128 * 1024 * 1024) * 3) // 4


# --------------------------------------------------------------------------
# Kernel 1: image normalization (preprocess_image), tiled over the H*W lanes
# --------------------------------------------------------------------------
def _normalize_image_kernel(x_ref, mean_ref, inv_std_ref, o_ref):
    # x: (N*C, tw); mean/inv_std: (N*C, 1) broadcast along lanes
    o_ref[...] = (x_ref[...] - mean_ref[...]) * inv_std_ref[...]


def preprocess_image(images, pixel_mean, pixel_std, *, lane_tile=16384):
    N, C, H, W = images.shape
    HW = H * W
    x = images.reshape(N * C, HW).astype(jnp.float32)
    mean_rows = jnp.tile(pixel_mean.astype(jnp.float32), (N,)).reshape(N * C, 1)
    inv_std_rows = jnp.tile(
        (1.0 / pixel_std).astype(jnp.float32), (N,)).reshape(N * C, 1)

    tw = min(_round_up(HW, 128), lane_tile)   # 128-multiple lane chunks
    grid = (pl.cdiv(HW, tw),)
    # TODO(synk): emit bf16 output here if the backbone consumes bf16.
    out = pl.pallas_call(
        _normalize_image_kernel,
        grid=grid,
        in_specs=[
            pl.BlockSpec((N * C, tw), lambda j: (0, j)),
            pl.BlockSpec((N * C, 1), lambda j: (0, 0)),
            pl.BlockSpec((N * C, 1), lambda j: (0, 0)),
        ],
        out_specs=pl.BlockSpec((N * C, tw), lambda j: (0, j)),
        out_shape=jax.ShapeDtypeStruct((N * C, HW), jnp.float32),
        compiler_params=pltpu.CompilerParams(
            dimension_semantics=("parallel",)),
    )(x, mean_rows, inv_std_rows)
    return out.reshape(N, C, H, W)


# --------------------------------------------------------------------------
# Kernel 2A: mean-pool -> box_predictor -> softmax -> unnormalized class
# prototype accumulation (student + teacher), R-tiled, per-core partials.
# --------------------------------------------------------------------------
def _make_accum_kernel(tr, n_rows, tiles_per_core):
    def kernel(s_bf_ref, t_bf_ref, w_s_ref, b_s_ref, w_t_ref, b_t_ref,
               acc_s_ref, cs_ref, acc_t_ref, ct_ref):
        p = pl.program_id(0)
        t = pl.program_id(1)

        @pl.when(t == 0)
        def _init():
            acc_s_ref[...] = jnp.zeros_like(acc_s_ref)
            cs_ref[...] = jnp.zeros_like(cs_ref)
            acc_t_ref[...] = jnp.zeros_like(acc_t_ref)
            ct_ref[...] = jnp.zeros_like(ct_ref)

        # row-validity mask for the (possibly partial) last tile
        row0 = (p * tiles_per_core + t) * tr
        rows = row0 + lax.broadcasted_iota(jnp.int32, (tr, 1), 0)
        valid = rows < n_rows                                     # (tr, 1)

        def branch(bf_ref, w_ref, b_ref, acc_ref, c_ref):
            K, C = w_ref.shape
            S = bf_ref.shape[1]
            x = bf_ref[...].astype(jnp.float32)                   # (tr, S, C)
            # spatial mean over the sublane axis (no cross-lane XLU reduce)
            feats = jnp.sum(x, axis=1) * (1.0 / S)                # (tr, C)
            feats = jnp.where(valid, feats, 0.0)
            logits = lax.dot_general(
                feats, w_ref[...],
                dimension_numbers=(((1,), (1,)), ((), ())),
                preferred_element_type=jnp.float32) + b_ref[...]  # (tr, K)
            # softmax over classes; approx reciprocal only in this hot loop
            m = jnp.max(logits, axis=1, keepdims=True)
            e = jnp.exp(logits - m)
            prob = e * pl.reciprocal(
                jnp.sum(e, axis=1, keepdims=True), approx=True)   # (tr, K)
            prob = jnp.where(valid, prob, 0.0)
            # per-class probability mass (cheap sublane reduce, no 1-lane MXU op)
            c_ref[...] += jnp.sum(
                prob, axis=0, keepdims=True).reshape(1, 1, K)
            # unnormalized prototype accumulation: prob^T @ feats
            acc_ref[...] += lax.dot_general(
                prob, feats,
                dimension_numbers=(((0,), (0,)), ((), ())),
                preferred_element_type=jnp.float32).reshape(1, K, C)

        branch(s_bf_ref, w_s_ref, b_s_ref, acc_s_ref, cs_ref)
        branch(t_bf_ref, w_t_ref, b_t_ref, acc_t_ref, ct_ref)

    return kernel


# --------------------------------------------------------------------------
# Kernel 2B: finalize — sum per-core partials, normalize prototypes,
# contrastive loss + 6 KD losses.  Runs once; exact math everywhere.
# --------------------------------------------------------------------------
def _finalize_kernel(acc_s_ref, cs_ref, acc_t_ref, ct_ref,
                     w_s_ref, b_s_ref, w_t_ref, b_t_ref, loss_ref):
    acc_s = jnp.sum(acc_s_ref[...], axis=0)          # (K, C)
    acc_t = jnp.sum(acc_t_ref[...], axis=0)
    cs = jnp.sum(cs_ref[...], axis=0)                # (1, K)
    ct = jnp.sum(ct_ref[...], axis=0)

    K = acc_s.shape[0]
    r_idx = lax.broadcasted_iota(jnp.int32, (K, K), 0)
    c_idx = lax.broadcasted_iota(jnp.int32, (K, K), 1)
    eye = r_idx == c_idx

    def col_normalize(acc, colsum):
        # prototypes = (prob^T feats) / colsum ; colsum > 0 (softmax), clamp
        inv = 1.0 / jnp.maximum(colsum, 1e-20)        # exact division
        diag = jnp.where(eye, jnp.broadcast_to(inv, (K, K)), 0.0)
        # diag(inv) @ acc — avoids any small transpose / relayout
        return lax.dot_general(
            diag, acc, dimension_numbers=(((1,), (0,)), ((), ())),
            preferred_element_type=jnp.float32)

    proto_s = col_normalize(acc_s, cs)
    proto_t = col_normalize(acc_t, ct)

    # ---- contrastive loss (F.normalize p=2 eps=1e-12, cos-sim / T) ----
    def l2_normalize(x):
        sq = jnp.sum(x * x, axis=1, keepdims=True)
        return x * lax.rsqrt(jnp.maximum(sq, 1e-24))

    tn = l2_normalize(proto_t)
    sn = l2_normalize(proto_s)
    sim = lax.dot_general(
        tn, sn, dimension_numbers=(((1,), (1,)), ((), ())),
        preferred_element_type=jnp.float32) * INV_TEMPERATURE     # (K, K)
    m = jnp.max(sim, axis=1, keepdims=True)
    lse = m + jnp.log(jnp.sum(jnp.exp(sim - m), axis=1, keepdims=True))
    log_prob = sim - lse
    loss_ref[0, 0] = -(jnp.sum(jnp.where(eye, log_prob, 0.0)) / K)

    # ---- prototype logits through both predictors ----
    def linear(x, w_ref, b_ref):
        return lax.dot_general(
            x, w_ref[...], dimension_numbers=(((1,), (1,)), ((), ())),
            preferred_element_type=jnp.float32) + b_ref[...]

    ss = linear(proto_s, w_s_ref, b_s_ref)
    tt = linear(proto_t, w_t_ref, b_t_ref)
    st = linear(proto_t, w_s_ref, b_s_ref)
    ts = linear(proto_s, w_t_ref, b_t_ref)

    # ---- KD losses: softmax / log-softmax computed once each, reused ----
    def log_softmax(x):
        mm = jnp.max(x, axis=1, keepdims=True)
        z = x - mm
        return z - jnp.log(jnp.sum(jnp.exp(z), axis=1, keepdims=True))

    lsm_ss = log_softmax(ss)
    lsm_tt = log_softmax(tt)
    lsm_st = log_softmax(st)
    lsm_ts = log_softmax(ts)
    p_ss = jnp.exp(lsm_ss)
    p_tt = jnp.exp(lsm_tt)
    p_ts = jnp.exp(lsm_ts)

    def kd(lsm_student, p_teacher, lsm_teacher):   # reduction='batchmean'
        return jnp.sum(p_teacher * (lsm_teacher - lsm_student)) / K

    loss_ref[0, 1] = kd(lsm_ss, p_tt, lsm_tt)      # ss_tt_const
    loss_ref[0, 2] = kd(lsm_st, p_ts, lsm_ts)      # st_ts_const
    loss_ref[0, 3] = kd(lsm_st, p_tt, lsm_tt)      # st_tt_const
    loss_ref[0, 4] = kd(lsm_ss, p_ts, lsm_ts)      # ss_ts_const
    loss_ref[0, 5] = kd(lsm_st, p_ss, lsm_ss)      # st_ss_const
    loss_ref[0, 6] = kd(lsm_tt, p_ts, lsm_ts)      # tt_ts_const


def fused_prototype_losses(s_box_features, t_box_features,
                           w_cls_student, b_cls_student,
                           w_cls_teacher, b_cls_teacher, *, tr=None):
    """Box features in (R, S, C) layout (channels on the lane axis)."""
    R, S, C = s_box_features.shape
    K = w_cls_student.shape[0]

    # bf16 streaming of the big feature tensors; weights/biases stay f32
    s_bf = s_box_features.astype(jnp.bfloat16)
    t_bf = t_box_features.astype(jnp.bfloat16)
    w_s = w_cls_student.astype(jnp.float32)
    w_t = w_cls_teacher.astype(jnp.float32)
    b_s = b_cls_student.astype(jnp.float32).reshape(1, K)
    b_t = b_cls_teacher.astype(jnp.float32).reshape(1, K)

    # ---- VMEM-budget-derived proposal tile --------------------------------
    vmem_budget = _vmem_budget_bytes()
    if tr is None:
        s_pad = _round_up(S, 8)
        c_pad = _round_up(C, 128)
        # per row of R: bf16 double-buffered input + f32 compute temp, x2 branches
        bytes_per_row = 2 * (2 * 2 + 4) * s_pad * c_pad
        feat_budget = max(vmem_budget - (8 << 20), 8 * bytes_per_row)
        tr = max(8, (feat_budget // bytes_per_row) // 8 * 8)
        tr = min(tr, _round_up(R, 8))
    tiles = -(-R // tr)                              # cdiv; last tile masked
    # leading "parallel" axis: per-core partial accumulators (2 TCs on v7x)
    P = 2 if (tiles % 2 == 0 and tiles >= 2) else 1
    T = tiles // P

    acc_s, cs, acc_t, ct = pl.pallas_call(
        _make_accum_kernel(tr, R, T),
        grid=(P, T),
        in_specs=[
            pl.BlockSpec((tr, S, C), lambda p, t: (p * T + t, 0, 0)),
            pl.BlockSpec((tr, S, C), lambda p, t: (p * T + t, 0, 0)),
            pl.BlockSpec((K, C), lambda p, t: (0, 0)),
            pl.BlockSpec((1, K), lambda p, t: (0, 0)),
            pl.BlockSpec((K, C), lambda p, t: (0, 0)),
            pl.BlockSpec((1, K), lambda p, t: (0, 0)),
        ],
        out_specs=(
            pl.BlockSpec((1, K, C), lambda p, t: (p, 0, 0)),
            pl.BlockSpec((1, 1, K), lambda p, t: (p, 0, 0)),
            pl.BlockSpec((1, K, C), lambda p, t: (p, 0, 0)),
            pl.BlockSpec((1, 1, K), lambda p, t: (p, 0, 0)),
        ),
        out_shape=(
            jax.ShapeDtypeStruct((P, K, C), jnp.float32),
            jax.ShapeDtypeStruct((P, 1, K), jnp.float32),
            jax.ShapeDtypeStruct((P, K, C), jnp.float32),
            jax.ShapeDtypeStruct((P, 1, K), jnp.float32),
        ),
        compiler_params=pltpu.CompilerParams(
            dimension_semantics=("parallel", "arbitrary"),
            vmem_limit_bytes=int(vmem_budget)),
    )(s_bf, t_bf, w_s, b_s, w_t, b_t)

    losses_vec = pl.pallas_call(
        _finalize_kernel,
        in_specs=[pl.BlockSpec(memory_space=pltpu.MemorySpace.VMEM)] * 8,
        out_specs=pl.BlockSpec(memory_space=pltpu.MemorySpace.SMEM),
        out_shape=jax.ShapeDtypeStruct((1, 7), jnp.float32),
    )(acc_s, cs, acc_t, ct, w_s, b_s, w_t, b_t)

    names = ("loss_ccl", "ss_tt_const", "st_ts_const", "st_tt_const",
             "ss_ts_const", "st_ss_const", "tt_ts_const")
    return {name: losses_vec[0, i] for i, name in enumerate(names)}


# --------------------------------------------------------------------------
# Forward pass of student_sfda_RCNN (training mode, first call: flag=True)
# --------------------------------------------------------------------------
def student_sfda_rcnn_forward(images, pixel_mean, pixel_std,
                              s_box_features, t_box_features,
                              w_cls_student, b_cls_student,
                              w_cls_teacher, b_cls_teacher, *, tr=None):
    # 1. preprocess_image — result returned (would feed the backbone)
    images_norm = preprocess_image(images, pixel_mean, pixel_std)

    # TODO(synk): backbone / proposal_generator / roi_heads detection losses
    # are opaque cfg-built detectron2 modules; s_box_features / t_box_features
    # stand in for roi_heads._shared_roi_transform outputs.

    # (R, C, Hp, Wp) -> (R, S, C): channels on the lane axis so the box-feature
    # stream is lane-dense and the spatial mean is a sublane reduction.
    # TODO(synk): in production have the ROI transform emit (R, S, C) directly.
    R, C, Hp, Wp = s_box_features.shape
    s_rsc = jnp.transpose(s_box_features.reshape(R, C, Hp * Wp), (0, 2, 1))
    t_rsc = jnp.transpose(t_box_features.reshape(R, C, Hp * Wp), (0, 2, 1))

    # 2-6. fused: mean-pool + box_predictor + class prototypes (both branches),
    # contrastive loss, 6 KD losses (first-call / flag == True semantics).
    losses = fused_prototype_losses(
        s_rsc, t_rsc,
        w_cls_student, b_cls_student,
        w_cls_teacher, b_cls_teacher, tr=tr)
    return losses, images_norm


# --------------------------------------------------------------------------
# Pure-JAX reference (mirrors the torch module, first-call semantics)
# --------------------------------------------------------------------------
def _reference_losses(s_rsc, t_rsc, w_s, b_s, w_t, b_t):
    def protos(bf, w, b):
        feats = bf.astype(jnp.bfloat16).astype(jnp.float32).mean(axis=1)
        logits = feats @ w.T + b
        prob = jax.nn.softmax(logits, axis=1)
        prob = prob / prob.sum(axis=0, keepdims=True)
        return prob.T @ feats

    ps = protos(s_rsc, w_s, b_s)
    pt = protos(t_rsc, w_t, b_t)

    def l2n(x):
        return x / jnp.maximum(
            jnp.sqrt(jnp.sum(x * x, axis=1, keepdims=True)), 1e-12)

    sim = (l2n(pt) @ l2n(ps).T) / TEMPERATURE
    logp = jax.nn.log_softmax(sim, axis=1)
    loss_ccl = -jnp.mean(jnp.diagonal(logp))

    def lin(x, w, b):
        return x @ w.T + b

    ss = lin(ps, w_s, b_s)
    tt = lin(pt, w_t, b_t)
    st = lin(pt, w_s, b_s)
    ts = lin(ps, w_t, b_t)

    def kd(student_logits, teacher_logits):
        p_t = jax.nn.softmax(teacher_logits, axis=1)
        return jnp.sum(p_t * (jax.nn.log_softmax(teacher_logits, axis=1)
                              - jax.nn.log_softmax(student_logits, axis=1))
                       ) / student_logits.shape[0]

    return {"loss_ccl": loss_ccl,
            "ss_tt_const": kd(ss, tt), "st_ts_const": kd(st, ts),
            "st_tt_const": kd(st, tt), "ss_ts_const": kd(ss, ts),
            "st_ss_const": kd(st, ss), "tt_ts_const": kd(tt, ts)}


# --------------------------------------------------------------------------
if __name__ == "__main__":
    key = jax.random.PRNGKey(0)
    k_img, k_sbf, k_tbf, k_ws, k_bs, k_wt, k_bt = jax.random.split(key, 7)

    # small, forward-consistent shapes
    N, C_img, H, W = 2, 3, 32, 32          # images (NCHW)
    R, C_feat, Hp, Wp = 56, 64, 4, 4       # ROI box features
    NUM_CLASSES = 8
    K = NUM_CLASSES + 1                    # box_predictor cls outputs (+bg)

    images = jax.random.uniform(k_img, (N, C_img, H, W),
                                dtype=jnp.float32) * 255.0
    pixel_mean = jnp.array([103.530, 116.280, 123.675], dtype=jnp.float32)
    pixel_std = jnp.array([57.375, 57.120, 58.395], dtype=jnp.float32)

    # synthetic roi_heads._shared_roi_transform outputs (R, C, Hp, Wp)
    s_box_features = jax.random.normal(k_sbf, (R, C_feat, Hp, Wp),
                                       dtype=jnp.float32)
    t_box_features = jax.random.normal(k_tbf, (R, C_feat, Hp, Wp),
                                       dtype=jnp.float32)

    # deterministic box_predictor (cls) parameters for student and teacher
    w_cls_student = 0.5 * jax.random.normal(k_ws, (K, C_feat), dtype=jnp.float32)
    b_cls_student = 0.1 * jax.random.normal(k_bs, (K,), dtype=jnp.float32)
    w_cls_teacher = 0.5 * jax.random.normal(k_wt, (K, C_feat), dtype=jnp.float32)
    b_cls_teacher = 0.1 * jax.random.normal(k_bt, (K,), dtype=jnp.float32)

    # tr=16 forces a 4-tile R reduction at toy shape so the masked partial
    # last tile AND the 2-way per-core partial-accumulator split are exercised.
    losses, images_norm = student_sfda_rcnn_forward(
        images, pixel_mean, pixel_std,
        s_box_features, t_box_features,
        w_cls_student, b_cls_student,
        w_cls_teacher, b_cls_teacher, tr=16)
    jax.block_until_ready(losses)
    jax.block_until_ready(images_norm)

    # ---- checks ----
    s_rsc = jnp.transpose(s_box_features.reshape(R, C_feat, Hp * Wp), (0, 2, 1))
    t_rsc = jnp.transpose(t_box_features.reshape(R, C_feat, Hp * Wp), (0, 2, 1))
    ref = _reference_losses(s_rsc, t_rsc, w_cls_student, b_cls_student,
                            w_cls_teacher, b_cls_teacher)
    for name, val in losses.items():
        v = float(val)
        r = float(ref[name])
        assert jnp.isfinite(val), f"non-finite loss {name}"
        assert abs(v - r) <= 2e-3 + 2e-2 * abs(r), f"{name}: {v} vs ref {r}"

    ref_img = (images - pixel_mean.reshape(1, 3, 1, 1)) / pixel_std.reshape(1, 3, 1, 1)
    assert bool(jnp.all(jnp.isfinite(images_norm)))
    assert bool(jnp.allclose(images_norm, ref_img, rtol=1e-5, atol=1e-5))
    print("KERNEL_OK")
</pallas_src>

<mosaic_0001>
module attributes {stable_mosaic.version = 11 : i64} {
  func.func @_normalize_image_kernel(%arg0: i32, %arg1: memref<6x1024xf32, #tpu.memory_space<vmem>>, %arg2: memref<6x1xf32, #tpu.memory_space<vmem>>, %arg3: memref<6x1xf32, #tpu.memory_space<vmem>>, %arg4: memref<6x1024xf32, #tpu.memory_space<vmem>>) attributes {dimension_semantics = [#tpu.dimension_semantics<parallel>], iteration_bounds = array<i64: 1>, scalar_prefetch = 0 : i64, scratch_operands = 0 : i64, tpu.core_type = #tpu.core_type<tc>, window_params = [{transform_indices = @transform_0, window_bounds = array<i64: 6, 1024>}, {pipeline_mode = #tpu.pipeline_mode<synchronous>, transform_indices = @transform_1, window_bounds = array<i64: 6, 1>}, {pipeline_mode = #tpu.pipeline_mode<synchronous>, transform_indices = @transform_2, window_bounds = array<i64: 6, 1>}, {transform_indices = @transform_3, window_bounds = array<i64: 6, 1024>}]} {
    %c0 = arith.constant 0 : index
    %c0_0 = arith.constant 0 : index
    %0 = vector.load %arg1[%c0, %c0_0] : memref<6x1024xf32, #tpu.memory_space<vmem>>, vector<6x1024xf32>
    %c0_1 = arith.constant 0 : index
    %c0_2 = arith.constant 0 : index
    %1 = vector.load %arg2[%c0_1, %c0_2] : memref<6x1xf32, #tpu.memory_space<vmem>>, vector<6x1xf32>
    %2 = vector.broadcast %1 : vector<6x1xf32> to vector<6x1024xf32>
    %3 = arith.subf %0, %2 : vector<6x1024xf32>
    %c0_3 = arith.constant 0 : index
    %c0_4 = arith.constant 0 : index
    %4 = vector.load %arg3[%c0_3, %c0_4] : memref<6x1xf32, #tpu.memory_space<vmem>>, vector<6x1xf32>
    %5 = vector.broadcast %4 : vector<6x1xf32> to vector<6x1024xf32>
    %6 = arith.mulf %3, %5 : vector<6x1024xf32>
    %c0_5 = arith.constant 0 : index
    %c0_6 = arith.constant 0 : index
    %7 = vector.load %arg4[%c0_5, %c0_6] : memref<6x1024xf32, #tpu.memory_space<vmem>>, vector<6x1024xf32>
    tpu.vector_store %arg4[%c0_5, %c0_6], %6 {strides = array<i32>} : memref<6x1024xf32, #tpu.memory_space<vmem>>, vector<6x1024xf32>,
    return
  }
  func.func @transform_0(%arg0: i32) -> (i32, i32) {
    %c0_i32 = arith.constant 0 : i32
    %c0_i32_0 = arith.constant 0 : i32
    return %c0_i32, %arg0 : i32, i32
  }
  func.func @transform_1(%arg0: i32) -> (i32, i32) {
    %c0_i32 = arith.constant 0 : i32
    %c0_i32_0 = arith.constant 0 : i32
    %c0_i32_1 = arith.constant 0 : i32
    return %c0_i32, %c0_i32_0 : i32, i32
  }
  func.func @transform_2(%arg0: i32) -> (i32, i32) {
    %c0_i32 = arith.constant 0 : i32
    %c0_i32_0 = arith.constant 0 : i32
    %c0_i32_1 = arith.constant 0 : i32
    return %c0_i32, %c0_i32_0 : i32, i32
  }
  func.func @transform_3(%arg0: i32) -> (i32, i32) {
    %c0_i32 = arith.constant 0 : i32
    %c0_i32_0 = arith.constant 0 : i32
    return %c0_i32, %arg0 : i32, i32
  }
}

</mosaic_0001>

<llo_original>
// kernel: tpu_custom_call.1
$region0: #{tpu_custom_call.1}
  #allocation0 [shape = 'u32[]', space=smem, size = 0x4, offset = 0x4, fixed_abs, tag = 'smem constant byte address 0x4 - core index']
  #allocation1 [shape = 'u32[144,128]{1,0:T(1,128)}', space=vmem, size = 0x12000, scoped, tag = 'internal scratch']
  %s0 = inlined_call_operand.hbm [shape: f32[6,1024], index: 0, kind: input, shape index: {}]
  %s1 = inlined_call_operand.vmem [shape: f32[6,1], index: 1, kind: input, shape index: {}]
  %s2 = inlined_call_operand.vmem [shape: f32[6,1], index: 2, kind: input, shape index: {}]
  %s3 = inlined_call_operand.hbm [shape: f32[6,1024], index: 3, kind: output, shape index: {}]
  %s4 = sld [smem:[#allocation0]]
  $region26: #{tpu_custom_call.1} parent=0
    _
  %s6 = ssub.s32 1, %s4
  %s7 = scalar_select 0, %s6, %s4
  $region1: #{tpu_custom_call.1} parent=0
    #allocation2 [shape = 'u8[32768]{0}', space=vmem, size = 0x8000, scoped, tag = 'input window, operand 0, single buffered']
    #allocation3 [shape = 's32[1]{0}', space=sflag, size = 0x4, scoped, tag = 'scoped memory for tpu_custom_call.1']
    #allocation4 [shape = 's32[1]{0}', space=sflag, size = 0x4, scoped, tag = 'scoped memory for tpu_custom_call.1']
    #allocation5 [shape = 'u8[32768]{0}', space=vmem, size = 0x8000, scoped, tag = 'output window, operand 0, single buffered']
    %8 = vsyncpa [#allocation3], 0
    %9 = vsyncpa [#allocation4], 0
    // Predicated region
    $region2: #{tpu_custom_call.1} parent=1 // pred_check
      _
    $region3: #{tpu_custom_call.1} parent=1 // pred_check_branch
      %11 = sbr.rel (0) target = $region5
    $region4: #{tpu_custom_call.1} parent=1 // pred_region
      %s13 = ssub.s32 1024, 1024
      %14 = vsyncadd [#allocation3], %s13
      %s16 = sshll.u32 [#allocation2], 4
      %s17 = int_to_ptr.vmem [resolvable:$true] %s16
      %19 = dma.hbm_to_vmem [thread:$0]  %s0, 1024, %s17, [#allocation3]
    $region5: #{tpu_custom_call.1} parent=1 // pred_fallthru
      _
    // Predicated region
    $region6: #{tpu_custom_call.1} parent=1 // pred_check
      _
    $region7: #{tpu_custom_call.1} parent=1 // pred_check_branch
      %21 = sbr.rel (0) target = $region9
    $region8: #{tpu_custom_call.1} parent=1 // pred_region
      _
    $region9: #{tpu_custom_call.1} parent=1 // pred_fallthru
      _
    // Predicated region
    $region10: #{tpu_custom_call.1} parent=1 // pred_check
      _
    $region11: #{tpu_custom_call.1} parent=1 // pred_check_branch
      %23 = sbr.rel (0) target = $region13
    $region12: #{tpu_custom_call.1} parent=1 // pred_region
      _
    $region13: #{tpu_custom_call.1} parent=1 // pred_fallthru
      _
    // Predicated region
    $region14: #{tpu_custom_call.1} parent=1 // pred_check
      _
    $region15: #{tpu_custom_call.1} parent=1 // pred_check_branch
      %25 = sbr.rel (0) target = $region17
    $region16: #{tpu_custom_call.1} parent=1 // pred_region
      %26 = dma.done [#allocation3], 1024
    $region17: #{tpu_custom_call.1} parent=1 // pred_fallthru
      _
    %v27 = vld [vmem:[#allocation2] sm:$0x3f]
    %v28 = vld [vmem:[#allocation2 + $0x8] sm:$0x3f]
    %v29 = vld [vmem:[#allocation2 + $0x10] sm:$0x3f]
    %v30 = vld [vmem:[#allocation2 + $0x18] sm:$0x3f]
    %v31 = vld [vmem:[#allocation2 + $0x20] sm:$0x3f]
    %v32 = vld [vmem:[#allocation2 + $0x28] sm:$0x3f]
    %v33 = vld [vmem:[#allocation2 + $0x30] sm:$0x3f]
    %v34 = vld [vmem:[#allocation2 + $0x38] sm:$0x3f]
    %v35 = vld [vmem:[%s1] sm:$0x3f]
    %37 = vset.pattern.permute.xlu0 0
    %38 = vperm.xlu0 %37, %v35
    %v39 = vpop.permute.xlu0 %38
    %v41 = vsub.f32 %v27, %v39
    %v42 = vsub.f32 %v28, %v39
    %v43 = vsub.f32 %v29, %v39
    %v44 = vsub.f32 %v30, %v39
    %v45 = vsub.f32 %v31, %v39
    %v46 = vsub.f32 %v32, %v39
    %v47 = vsub.f32 %v33, %v39
    %v48 = vsub.f32 %v34, %v39
    %v49 = vld [vmem:[%s2] sm:$0x3f]
    %51 = vset.pattern.permute.xlu0 0
    %52 = vperm.xlu0 %51, %v49
    %v53 = vpop.permute.xlu0 %52
    %v55 = vmul.f32 %v41, %v53
    %v56 = vmul.f32 %v42, %v53
    %v57 = vmul.f32 %v43, %v53
    %v58 = vmul.f32 %v44, %v53
    %v59 = vmul.f32 %v45, %v53
    %v60 = vmul.f32 %v46, %v53
    %v61 = vmul.f32 %v47, %v53
    %v62 = vmul.f32 %v48, %v53
    %63 = vst [vmem:[#allocation5] sm:$0x3f] %v55
    %64 = vst [vmem:[#allocation5 + $0x8] sm:$0x3f] %v56
    %65 = vst [vmem:[#allocation5 + $0x10] sm:$0x3f] %v57
    %66 = vst [vmem:[#allocation5 + $0x18] sm:$0x3f] %v58
    %67 = vst [vmem:[#allocation5 + $0x20] sm:$0x3f] %v59
    %68 = vst [vmem:[#allocation5 + $0x28] sm:$0x3f] %v60
    %69 = vst [vmem:[#allocation5 + $0x30] sm:$0x3f] %v61
    %70 = vst [vmem:[#allocation5 + $0x38] sm:$0x3f] %v62
    // Predicated region
    $region18: #{tpu_custom_call.1} parent=1 // pred_check
      _
    $region19: #{tpu_custom_call.1} parent=1 // pred_check_branch
      %72 = sbr.rel (0) target = $region21
    $region20: #{tpu_custom_call.1} parent=1 // pred_region
      %s74 = ssub.s32 1024, 1024
      %75 = vsyncadd [#allocation4], %s74
      %s77 = sshll.u32 [#allocation5], 4
      %s78 = int_to_ptr.vmem [resolvable:$true] %s77
      %80 = dma.vmem_to_hbm [thread:$0]  %s78, 1024, %s3, [#allocation4]
    $region21: #{tpu_custom_call.1} parent=1 // pred_fallthru
      _
    // Predicated region
    $region22: #{tpu_custom_call.1} parent=1 // pred_check
      _
    $region23: #{tpu_custom_call.1} parent=1 // pred_check_branch
      %82 = sbr.rel (0) target = $region25
    $region24: #{tpu_custom_call.1} parent=1 // pred_region
      %83 = dma.done [#allocation4], 1024
    $region25: #{tpu_custom_call.1} parent=1 // pred_fallthru
      _
    %84 = vsyncpa [#allocation3], 1
    %85 = vsyncpa [#allocation4], 1

</llo_original>
